<compile_context>
chip_gen: v7x
topology: tpu7x:2x2x1
jax: 0.10.0
libtpu: 0.0.40
codegen_flags: <defaults>
</compile_context>

<pallas_src>
import jax
import jax.numpy as jnp
import numpy as np
from jax.experimental import pallas as pl
from jax.experimental.pallas import tpu as pltpu

_LANE = 128
# Minimum sublane multiple per element byte width: f32 -> 8, bf16 -> 16, int8/fp8 -> 32.
_SUBLANE_BY_ITEMSIZE = {4: 8, 2: 16, 1: 32}
_MAX_TILE_ROWS = 4096  # diminishing returns past a few thousand rows per step


def _identity_kernel(edges_ref, out_ref):
    # Pure pass-through: load the (tile_e, D_pad) tile from VMEM, store it back.
    out_ref[...] = edges_ref[...]


def _round_up(x, m):
    return ((x + m - 1) // m) * m


def _physical_vmem_bytes():
    try:
        return int(pltpu.get_tpu_info().vmem_capacity_bytes)
    except Exception:
        # Conservative fallback = v7x per-TensorCore VMEM.
        return 64 * 1024 * 1024


def _choose_tile_e(E, D_pad, itemsize, sublane):
    """Largest sublane-aligned row block whose double-buffered in+out tiles fit VMEM."""
    vmem = _physical_vmem_bytes()
    # 4 live tiles (input + output, each double-buffered); keep total <= ~half VMEM.
    per_buffer = (vmem // 2) // 4
    rows = per_buffer // max(1, D_pad * itemsize)
    tile_e = max(sublane, (rows // sublane) * sublane)
    tile_e = min(tile_e, _MAX_TILE_ROWS)
    # Never larger than the (sublane-rounded) data.
    tile_e = min(tile_e, _round_up(E, sublane))
    # Prefer >= 2 grid steps so v7x's two TensorCores can split the "parallel" axis.
    if _round_up(E, tile_e) // tile_e < 2 and tile_e >= 2 * sublane:
        tile_e = max(sublane, (tile_e // 2 // sublane) * sublane)
    return tile_e


def hete_edge_aggregator_forward(edges):
    """Pallas equivalent of HeteEdgeAggregator.forward(edges).

    The PyTorch forward is a no-op stub; this returns `edges` unchanged after a
    VMEM-tiled, HBM-bandwidth-sized Pallas identity pipeline.
    """
    E, D = edges.shape
    itemsize = jnp.dtype(edges.dtype).itemsize
    sublane = _SUBLANE_BY_ITEMSIZE.get(itemsize, 8)

    # Lane-dense feature axis (avoid masked vst partial stores).
    D_pad = _round_up(D, _LANE)
    tile_e = _choose_tile_e(E, D_pad, itemsize, sublane)
    grid_e = pl.cdiv(E, tile_e)
    E_pad = grid_e * tile_e

    x = edges
    if (E_pad, D_pad) != (E, D):
        x = jnp.pad(edges, ((0, E_pad - E), (0, D_pad - D)))

    # Scoped VMEM: input + output, double-buffered, plus headroom.
    phys_vmem = _physical_vmem_bytes()
    tile_bytes = tile_e * D_pad * itemsize
    vmem_limit = 4 * tile_bytes + (4 << 20)
    vmem_limit = max(vmem_limit, 32 << 20)
    vmem_limit = min(vmem_limit, phys_vmem - (8 << 20))

    out = pl.pallas_call(
        _identity_kernel,
        out_shape=jax.ShapeDtypeStruct((E_pad, D_pad), edges.dtype),
        grid_spec=pltpu.PrefetchScalarGridSpec(
            num_scalar_prefetch=0,
            grid=(grid_e,),
            in_specs=[pl.BlockSpec((tile_e, D_pad), lambda i: (i, 0))],
            out_specs=pl.BlockSpec((tile_e, D_pad), lambda i: (i, 0)),
        ),
        compiler_params=pltpu.CompilerParams(
            dimension_semantics=("parallel",),
            vmem_limit_bytes=int(vmem_limit),
        ),
        # Output aliases the input buffer: no extra HBM round trip when donatable.
        input_output_aliases={0: 0},
    )(x)

    if (E_pad, D_pad) != (E, D):
        out = out[:E, :D]
    return out


_forward_jit = jax.jit(hete_edge_aggregator_forward)


class HeteEdgeAggregator:
    """Thin JAX-side mirror of the PyTorch module (no parameters)."""

    def __init__(self, dataset, encoder=None, **kwargs):
        self.dataset = dataset
        self.encoder = encoder
        self.layer = kwargs.get("layer", 1)

    def forward(self, edges):
        # Reference returns None; we expose the Pallas-routed identity instead
        # so there is something concrete to execute and verify.
        return _forward_jit(edges)


if __name__ == "__main__":
    key = jax.random.PRNGKey(0)
    k1, k2 = jax.random.split(key)

    agg = HeteEdgeAggregator(dataset="synthetic", encoder=None, layer=1)

    # Case 1: f32 edges, E=200 x D=96 — exercises E- and D-padding (lane-dense) paths.
    edges_f32 = jax.random.normal(k1, (200, 96), dtype=jnp.float32)
    exp_f32 = np.asarray(edges_f32)  # host copy taken before any potential donation
    out_f32 = jax.block_until_ready(agg.forward(edges_f32))
    assert out_f32.shape == (200, 96) and out_f32.dtype == jnp.float32
    assert np.array_equal(np.asarray(out_f32), exp_f32)

    # Case 2: bf16 edges, 64 x 128 — exercises dtype-aware sublane tiling + aliased path.
    edges_bf16 = jax.random.normal(k2, (64, 128), dtype=jnp.bfloat16)
    exp_bf16 = np.asarray(edges_bf16).astype(np.float32)
    out_bf16 = jax.block_until_ready(agg.forward(edges_bf16))
    assert out_bf16.shape == (64, 128) and out_bf16.dtype == jnp.bfloat16
    assert np.array_equal(np.asarray(out_bf16).astype(np.float32), exp_bf16)

    print("KERNEL_OK")
</pallas_src>

<mosaic_0001>
module attributes {stable_mosaic.version = 11 : i64} {
  func.func @_identity_kernel(%arg0: i32, %arg1: memref<96x128xf32, #tpu.memory_space<vmem>>, %arg2: memref<96x128xf32, #tpu.memory_space<vmem>>) attributes {dimension_semantics = [#tpu.dimension_semantics<parallel>], iteration_bounds = array<i64: 3>, scalar_prefetch = 0 : i64, scratch_operands = 0 : i64, tpu.core_type = #tpu.core_type<tc>, window_params = [{transform_indices = @transform_0, window_bounds = array<i64: 96, 128>}, {transform_indices = @transform_1, window_bounds = array<i64: 96, 128>}]} {
    %c0 = arith.constant 0 : index
    %c0_0 = arith.constant 0 : index
    %0 = vector.load %arg1[%c0, %c0_0] : memref<96x128xf32, #tpu.memory_space<vmem>>, vector<96x128xf32>
    %c0_1 = arith.constant 0 : index
    %c0_2 = arith.constant 0 : index
    %1 = vector.load %arg2[%c0_1, %c0_2] : memref<96x128xf32, #tpu.memory_space<vmem>>, vector<96x128xf32>
    tpu.vector_store %arg2[%c0_1, %c0_2], %0 {strides = array<i32>} : memref<96x128xf32, #tpu.memory_space<vmem>>, vector<96x128xf32>,
    return
  }
  func.func @transform_0(%arg0: i32) -> (i32, i32) {
    %c0_i32 = arith.constant 0 : i32
    %c0_i32_0 = arith.constant 0 : i32
    return %arg0, %c0_i32 : i32, i32
  }
  func.func @transform_1(%arg0: i32) -> (i32, i32) {
    %c0_i32 = arith.constant 0 : i32
    %c0_i32_0 = arith.constant 0 : i32
    return %arg0, %c0_i32 : i32, i32
  }
}

</mosaic_0001>

<llo_original>
// kernel: hete_edge_aggregator_forward.1
$region0: #{hete_edge_aggregator_forward.1}
  #allocation0 [shape = 'u32[]', space=smem, size = 0x4, offset = 0x4, fixed_abs, tag = 'smem constant byte address 0x4 - core index']
  #allocation1 [shape = 'u32[144,128]{1,0:T(1,128)}', space=vmem, size = 0x12000, scoped, tag = 'internal scratch']
  %s0 = inlined_call_operand.vmem [shape: f32[288,128], index: 0, kind: input, shape index: {}, may-alias: {0,1}]
  %s1 = inlined_call_operand.vmem [shape: f32[288,128], index: 1, kind: output, shape index: {}, may-alias: {0,1}]
  %s2 = sld [smem:[#allocation0]]
  $region37: #{hete_edge_aggregator_forward.1} parent=0
    _
  %s4 = ssub.s32 1, %s2
  %s5 = scalar_select 0, %s4, %s2
  loop: start=0, step=1, limit=5
  $region2: #{hete_edge_aggregator_forward.1} parent=0 // loop_pre_header
    _
  $region3: #{hete_edge_aggregator_forward.1} parent=0 // loop_header
    %s7 = sphi 0, %s11
    %p8 = scmp.ge.s32.totalorder %s7, 5
    %s17 = sphi 0, %s19
    %s20 = sphi 0, %s17
    %s21 = sphi 0, %s20
    %s37 = sphi 0, %s21
    %s43 = sphi 0, %s45
    %s46 = sphi 0, %s43
    %s47 = sphi 0, %s46
    %s63 = sphi 0, %s47
  $region4: #{hete_edge_aggregator_forward.1} parent=0 // loop_header_branch
    %10 = sbr.rel (%p8) target = $region8
  $region5: #{hete_edge_aggregator_forward.1} parent=0 // loop_body
    %s12 = ssub.s32 %s7, 1
    %s13 = ssub.s32 %s7, 2
    %s14 = sadd.s32 %s7, 1
    %s15 = ssub.s32 %s7, %s14
    %p16 = scmp.eq.s32.totalorder %s15, 0
    %s18 = sadd.s32 %s17, 1
    %s19 = scalar_select %p16, %s17, %s18
    %p22 = pneg %p16
    %p23 = scmp.eq.s32.totalorder %s7, 2
    %p24 = por %p22, %p23
    %p25 = scmp.ne.s32.totalorder %s17, %s20
    %p26 = scmp.eq.s32.totalorder %s7, 0
    %p27 = por %p25, %p26
    %p28 = scmp.ne.s32.totalorder %s17, %s20
    %p29 = scmp.eq.s32.totalorder %s12, 2
    %p30 = por %p28, %p29
    %p31 = scmp.ne.s32.totalorder %s20, %s21
    %p32 = scmp.eq.s32.totalorder %s12, 0
    %p33 = por %p31, %p32
    %p34 = scmp.ne.s32.totalorder %s20, %s21
    %p35 = scmp.eq.s32.totalorder %s13, 2
    %p36 = por %p34, %p35
    %p38 = scmp.ne.s32.totalorder %s21, %s37
    %p39 = scmp.eq.s32.totalorder %s13, 0
    %p40 = por %p38, %p39
    %s41 = ssub.s32 %s7, %s14
    %p42 = scmp.eq.s32.totalorder %s41, 0
    %s44 = sadd.s32 %s43, 1
    %s45 = scalar_select %p42, %s43, %s44
    %p48 = pneg %p42
    %p49 = scmp.eq.s32.totalorder %s7, 2
    %p50 = por %p48, %p49
    %p51 = scmp.ne.s32.totalorder %s43, %s46
    %p52 = scmp.eq.s32.totalorder %s7, 0
    %p53 = por %p51, %p52
    %p54 = scmp.ne.s32.totalorder %s43, %s46
    %p55 = scmp.eq.s32.totalorder %s12, 2
    %p56 = por %p54, %p55
    %p57 = scmp.ne.s32.totalorder %s46, %s47
    %p58 = scmp.eq.s32.totalorder %s12, 0
    %p59 = por %p57, %p58
    %p60 = scmp.ne.s32.totalorder %s46, %s47
    %p61 = scmp.eq.s32.totalorder %s13, 2
    %p62 = por %p60, %p61
    %p64 = scmp.ne.s32.totalorder %s47, %s63
    %p65 = scmp.eq.s32.totalorder %s13, 0
    %p66 = por %p64, %p65
    %p67 = scmp.le.s32.totalorder 1, %s7
    %p68 = scmp.lt.s32.totalorder %s7, 4
    %p69 = pnand %p67, %p68
    %p70 = pneg %p69
    // Predicated region
    $region9: #{hete_edge_aggregator_forward.1} parent=5 // pred_check
      _
    $region10: #{hete_edge_aggregator_forward.1} parent=5 // pred_check_branch
      %72 = sbr.rel (%p69) target = $region12
    $region11: #{hete_edge_aggregator_forward.1} parent=5 // pred_region
      %s73 = ssub.s32 %s7, 1
    $region12: #{hete_edge_aggregator_forward.1} parent=5 // pred_fallthru
      _
    %p74 = scmp.lt.s32.totalorder %s7, 3
    // Predicated region
    $region13: #{hete_edge_aggregator_forward.1} parent=5 // pred_check
      %p75 = pneg %p74
    $region14: #{hete_edge_aggregator_forward.1} parent=5 // pred_check_branch
      %77 = sbr.rel (%p75) target = $region16
    $region15: #{hete_edge_aggregator_forward.1} parent=5 // pred_region
      // Predicated region
      $region17: #{hete_edge_aggregator_forward.1} parent=15 // pred_check
        %p78 = pneg %p27
      $region18: #{hete_edge_aggregator_forward.1} parent=15 // pred_check_branch
        %80 = sbr.rel (%p78) target = $region20
      $region19: #{hete_edge_aggregator_forward.1} parent=15 // pred_region
        %s81 = smul.u32 12, %s7
        %p82 = scmp.lt.s32.totalorder %s81, 35
        %s83 = scalar_select %p82, %s81, 35
        %s84 = smul.addr %s83, 8
        %s85 = scalar_lea.vmem %s0, %s84
        %s86 = smul.u32 12, %s7
      $region20: #{hete_edge_aggregator_forward.1} parent=15 // pred_fallthru
        _
    $region16: #{hete_edge_aggregator_forward.1} parent=5 // pred_fallthru
      _
    %p87 = scmp.le.s32.totalorder 1, %s7
    %p88 = scmp.lt.s32.totalorder %s7, 4
    %p89 = pnand %p87, %p88
    %p90 = pneg %p89
    // Predicated region
    $region21: #{hete_edge_aggregator_forward.1} parent=5 // pred_check
      _
    $region22: #{hete_edge_aggregator_forward.1} parent=5 // pred_check_branch
      %92 = sbr.rel (%p89) target = $region24
    $region23: #{hete_edge_aggregator_forward.1} parent=5 // pred_region
      %s93 = ssub.s32 %s7, 1
      %s94 = smul.u32 12, %s12
      %p95 = scmp.lt.s32.totalorder %s94, 35
      %s96 = scalar_select %p95, %s94, 35
      %s97 = smul.addr %s96, 8
      %s98 = scalar_lea.vmem %s0, %s97
      %p99 = pneg %p33
      %p100 = pneg %p30
      %p101 = pneg %p59
      %p102 = pneg %p56
      %s103 = smul.u32 12, %s12
      %p104 = scmp.lt.s32.totalorder %s103, 35
      %s105 = scalar_select %p104, %s103, 35
      %s106 = smul.addr %s105, 8
      %s107 = scalar_lea.vmem %s1, %s106
      %s108 = smul.u32 12, %s12
      %p109 = scmp.lt.s32.totalorder %s108, 35
      %s110 = scalar_select %p109, %s108, 35
      %s111 = smul.addr %s110, 8
      %s112 = scalar_lea.vmem %s0, %s111
      %s113 = smul.u32 12, %s12
      %s114 = smul.u32 12, %s12
      %p115 = scmp.lt.s32.totalorder %s114, 35
      %s116 = scalar_select %p115, %s114, 35
      %s117 = smul.addr %s116, 8
      %s118 = scalar_lea.vmem %s1, %s117
      %s119 = smul.u32 12, %s12
      %v120 = vld [vmem:[%s112] sm:$0xff]
      %v121 = vld [vmem:[%s112 + $0x8] sm:$0xff]
      %v122 = vld [vmem:[%s112 + $0x10] sm:$0xff]
      %v123 = vld [vmem:[%s112 + $0x18] sm:$0xff]
      %v124 = vld [vmem:[%s112 + $0x20] sm:$0xff]
      %v125 = vld [vmem:[%s112 + $0x28] sm:$0xff]
      %v126 = vld [vmem:[%s112 + $0x30] sm:$0xff]
      %v127 = vld [vmem:[%s112 + $0x38] sm:$0xff]
      %v128 = vld [vmem:[%s112 + $0x40] sm:$0xff]
      %v129 = vld [vmem:[%s112 + $0x48] sm:$0xff]
      %v130 = vld [vmem:[%s112 + $0x50] sm:$0xff]
      %v131 = vld [vmem:[%s112 + $0x58] sm:$0xff]
      %132 = vst [vmem:[%s118] sm:$0xff] %v120
      %133 = vst [vmem:[%s118 + $0x8] sm:$0xff] %v121
      %134 = vst [vmem:[%s118 + $0x10] sm:$0xff] %v122
      %135 = vst [vmem:[%s118 + $0x18] sm:$0xff] %v123
      %136 = vst [vmem:[%s118 + $0x20] sm:$0xff] %v124
      %137 = vst [vmem:[%s118 + $0x28] sm:$0xff] %v125
      %138 = vst [vmem:[%s118 + $0x30] sm:$0xff] %v126
      %139 = vst [vmem:[%s118 + $0x38] sm:$0xff] %v127
      %140 = vst [vmem:[%s118 + $0x40] sm:$0xff] %v128
      %141 = vst [vmem:[%s118 + $0x48] sm:$0xff] %v129
      %142 = vst [vmem:[%s118 + $0x50] sm:$0xff] %v130
      %143 = vst [vmem:[%s118 + $0x58] sm:$0xff] %v131
      %s144 = smul.u32 12, %s12
      %p145 = scmp.lt.s32.totalorder %s144, 35
      %s146 = scalar_select %p145, %s144, 35
      %s147 = smul.addr %s146, 8
      %s148 = scalar_lea.vmem %s1, %s147
      // Predicated region
      $region25: #{hete_edge_aggregator_forward.1} parent=23 // pred_check
        %p149 = pneg %p56
      $region26: #{hete_edge_aggregator_forward.1} parent=23 // pred_check_branch
        %151 = sbr.rel (%p149) target = $region28
      $region27: #{hete_edge_aggregator_forward.1} parent=23 // pred_region
        %s152 = smul.u32 12, %s12
      $region28: #{hete_edge_aggregator_forward.1} parent=23 // pred_fallthru
        _
    $region24: #{hete_edge_aggregator_forward.1} parent=5 // pred_fallthru
      _
    %p153 = scmp.le.s32.totalorder 2, %s7
    // Predicated region
    $region29: #{hete_edge_aggregator_forward.1} parent=5 // pred_check
      %p154 = pneg %p153
    $region30: #{hete_edge_aggregator_forward.1} parent=5 // pred_check_branch
      %156 = sbr.rel (%p154) target = $region32
    $region31: #{hete_edge_aggregator_forward.1} parent=5 // pred_region
      %s157 = ssub.s32 %s7, 2
      // Predicated region
      $region33: #{hete_edge_aggregator_forward.1} parent=31 // pred_check
        %p158 = pneg %p62
      $region34: #{hete_edge_aggregator_forward.1} parent=31 // pred_check_branch
        %160 = sbr.rel (%p158) target = $region36
      $region35: #{hete_edge_aggregator_forward.1} parent=31 // pred_region
        %s161 = smul.u32 12, %s13
        %p162 = scmp.lt.s32.totalorder %s161, 35
        %s163 = scalar_select %p162, %s161, 35
        %s164 = smul.addr %s163, 8
        %s165 = scalar_lea.vmem %s1, %s164
      $region36: #{hete_edge_aggregator_forward.1} parent=31 // pred_fallthru
        _
    $region32: #{hete_edge_aggregator_forward.1} parent=5 // pred_fallthru
      _
  $region6: #{hete_edge_aggregator_forward.1} parent=0 // loop_footer
    %s11 = sadd.s32 1, %s7
  $region7: #{hete_edge_aggregator_forward.1} parent=0 // loop_footer_branch
    %6 = sbr.rel target = $region3
  $region8: #{hete_edge_aggregator_forward.1} parent=0 // loop_exit
    _

</llo_original>
